<compile_context>
chip_gen: v7x
topology: tpu7x:2x2x1
jax: 0.10.0
libtpu: 0.0.40
codegen_flags: <defaults>
</compile_context>

<pallas_src>
import functools

import jax
import jax.numpy as jnp
from jax.experimental import pallas as pl
from jax.experimental.pallas import tpu as pltpu


# ----------------------------- Pallas kernel ------------------------------- #
def _conv_fused_kernel(x_ref, w_ref, b_ref, o_ref, *scratch, k, H, W, Wp):
    """One image per grid step; one MXU contraction over Cin*k*k.

    x_ref : (1, Cin, Lin)    bf16  zero-padded image, spatial dims flattened
                                   with the padded width Wp (+1 slack row, k>1).
    w_ref : (Cout, Cin*k*k)  bf16  w_ref[o, (dy*k+dx)*Cin + c] == weight[o,c,dy,dx]
    b_ref : (Cout, 1)        f32
    o_ref : (1, Cout, H, W)  f32   final NCHW output tile (cropped in-kernel).
    scratch: () for k == 1, else (patch_ref,) with patch_ref (Cin*k*k, H*Wp) bf16.
    """
    cin = x_ref.shape[1]
    L = H * Wp

    if k == 1:
        rhs = x_ref[0]                                  # (Cin, H*W); Wp == W
    else:
        patch_ref, = scratch
        # Build the im2col patch once in VMEM: k*k static shifted slab copies.
        for dy in range(k):
            for dx in range(k):
                tap = dy * k + dx
                off = dy * Wp + dx                      # static lane offset
                patch_ref[tap * cin:(tap + 1) * cin, :] = x_ref[0, :, off:off + L]
        rhs = patch_ref[...]

    # Single MXU matmul, f32 accumulation, f32 bias add.
    res = jnp.dot(w_ref[...], rhs, preferred_element_type=jnp.float32)
    res = res + b_ref[...]

    # Crop the (Wp - W) wrapped/padded columns while storing: write each output
    # row's first W lanes straight into the NCHW output block, so no wrapper
    # crop pass over HBM is needed.
    # TODO(synk): for large H replace this unrolled row loop with an H-tiled
    #             grid axis + lane-dense stores.
    for h in range(H):
        o_ref[0, :, h, :] = res[:, h * Wp:h * Wp + W].astype(o_ref.dtype)


# ------------------------------ myConv2d ----------------------------------- #
def my_conv2d_init(key, in_channels, out_channels, kernel_size=1):
    """Deterministic params mirroring nn.Conv2d shapes (PyTorch-style uniform init)."""
    kw, kb = jax.random.split(key)
    fan_in = in_channels * kernel_size * kernel_size
    bound = 1.0 / jnp.sqrt(jnp.asarray(fan_in, jnp.float32))
    weight = jax.random.uniform(
        kw, (out_channels, in_channels, kernel_size, kernel_size),
        dtype=jnp.float32, minval=-bound, maxval=bound)
    bias = jax.random.uniform(
        kb, (out_channels,), dtype=jnp.float32, minval=-bound, maxval=bound)
    return {"weight": weight, "bias": bias, "kernel_size": kernel_size}


@functools.partial(jax.jit, static_argnames=("kernel_size",))
def my_conv2d_apply(x_nchw, weight, bias, kernel_size):
    """Forward pass of myConv2d. x_nchw: (N, C_in, H, W) -> (N, C_out, H, W)."""
    if kernel_size % 2 == 0:
        # TODO(synk): even kernel sizes need PyTorch's asymmetric same-padding.
        raise NotImplementedError("myConv2d Pallas kernel supports odd kernel_size only")

    N, Cin, H, W = x_nchw.shape
    Cout = weight.shape[0]
    k = kernel_size
    p = (k - 1) // 2
    Wp = W + 2 * p

    # Zero-pad spatially in native NCHW layout (pad + bf16 cast + reshape fuse
    # into one XLA pass).  One extra bottom row gives the slack needed for the
    # wrapped (discarded) columns of the flattened-Wp layout:
    #   max flat index = (H + 2p)*Wp + k - 2  <  (H + 2p + 1)*Wp = Lin.
    if p > 0:
        xq = jnp.pad(x_nchw, ((0, 0), (0, 0), (p, p + 1), (p, p)))
    else:
        xq = x_nchw
    Hq = xq.shape[2]
    Lin = Hq * Wp
    xf = xq.reshape(N, Cin, Lin).astype(jnp.bfloat16)

    # PyTorch weight (Cout, Cin, kH, kW) -> (Cout, kH*kW*Cin), matching the
    # patch row order tap*Cin + cin with tap = dy*k + dx; bias -> (Cout, 1).
    K = Cin * k * k
    w2 = jnp.transpose(weight, (0, 2, 3, 1)).reshape(Cout, K).astype(jnp.bfloat16)
    b2 = bias.reshape(Cout, 1).astype(jnp.float32)

    kern = functools.partial(_conv_fused_kernel, k=k, H=H, W=W, Wp=Wp)
    scratch = [] if k == 1 else [pltpu.VMEM((K, H * Wp), jnp.bfloat16)]

    out = pl.pallas_call(
        kern,
        out_shape=jax.ShapeDtypeStruct((N, Cout, H, W), jnp.float32),
        grid_spec=pltpu.PrefetchScalarGridSpec(
            num_scalar_prefetch=0,
            grid=(N,),
            in_specs=[
                pl.BlockSpec((1, Cin, Lin), lambda n: (n, 0, 0)),
                pl.BlockSpec((Cout, K), lambda n: (0, 0)),
                pl.BlockSpec((Cout, 1), lambda n: (0, 0)),
            ],
            out_specs=pl.BlockSpec((1, Cout, H, W), lambda n: (n, 0, 0, 0)),
            scratch_shapes=scratch,
        ),
        compiler_params=pltpu.CompilerParams(
            dimension_semantics=("parallel",),
        ),
    )(xf, w2, b2)
    return out


# ----------------------------- test harness -------------------------------- #
def _reference_conv(x_nchw, weight, bias, k):
    pad = (k - 1) // 2
    out = jax.lax.conv_general_dilated(
        x_nchw, weight,
        window_strides=(1, 1),
        padding=((pad, pad), (pad, pad)),
        dimension_numbers=("NCHW", "OIHW", "NCHW"),
        precision=jax.lax.Precision.HIGHEST)
    return out + bias[None, :, None, None]


if __name__ == "__main__":
    key = jax.random.PRNGKey(0)
    kx, kp1, kp3 = jax.random.split(key, 3)

    N, Cin, H, W = 2, 4, 16, 16
    Cout = 8
    x = jax.random.normal(kx, (N, Cin, H, W), dtype=jnp.float32)

    ok = True
    for ksize, kparam in ((1, kp1), (3, kp3)):
        params = my_conv2d_init(kparam, Cin, Cout, kernel_size=ksize)
        out = my_conv2d_apply(x, params["weight"], params["bias"],
                              kernel_size=ksize)
        out = jax.block_until_ready(out)

        # Reference on bf16-rounded inputs (the kernel's matmul path is bf16
        # with exact f32 accumulation), so the comparison stays tight.
        xb = x.astype(jnp.bfloat16).astype(jnp.float32)
        wb = params["weight"].astype(jnp.bfloat16).astype(jnp.float32)
        ref = _reference_conv(xb, wb, params["bias"], ksize)

        ok = ok and (out.shape == (N, Cout, H, W))
        ok = ok and bool(jnp.allclose(out, ref, atol=1e-4, rtol=1e-4))

    if ok:
        print("KERNEL_OK")
    else:
        print("KERNEL_MISMATCH")
</pallas_src>

<mosaic_0001>
module attributes {stable_mosaic.version = 11 : i64} {
  func.func @_conv_fused_kernel(%arg0: i32, %arg1: memref<1x4x256xbf16, #tpu.memory_space<vmem>>, %arg2: memref<8x4xbf16, #tpu.memory_space<vmem>>, %arg3: memref<8x1xf32, #tpu.memory_space<vmem>>, %arg4: memref<1x8x16x16xf32, #tpu.memory_space<vmem>>) attributes {dimension_semantics = [#tpu.dimension_semantics<parallel>], iteration_bounds = array<i64: 2>, scalar_prefetch = 0 : i64, scratch_operands = 0 : i64, tpu.core_type = #tpu.core_type<tc>, window_params = [{transform_indices = @transform_0, window_bounds = array<i64: 1, 4, 256>}, {pipeline_mode = #tpu.pipeline_mode<synchronous>, transform_indices = @transform_1, window_bounds = array<i64: 8, 4>}, {pipeline_mode = #tpu.pipeline_mode<synchronous>, transform_indices = @transform_2, window_bounds = array<i64: 8, 1>}, {transform_indices = @transform_3, window_bounds = array<i64: 1, 8, 16, 16>}]} {
    %c0 = arith.constant 0 : index
    %c0_0 = arith.constant 0 : index
    %c0_1 = arith.constant 0 : index
    %0 = vector.load %arg1[%c0, %c0_0, %c0_1] : memref<1x4x256xbf16, #tpu.memory_space<vmem>>, vector<1x4x256xbf16>
    %1 = vector.shape_cast %0 : vector<1x4x256xbf16> to vector<4x256xbf16>
    %c0_2 = arith.constant 0 : index
    %c0_3 = arith.constant 0 : index
    %2 = vector.load %arg2[%c0_2, %c0_3] : memref<8x4xbf16, #tpu.memory_space<vmem>>, vector<8x4xbf16>
    %cst = arith.constant dense<0.000000e+00> : vector<8x256xf32>
    %3 = tpu.matmul %2, %1, %cst {dimension_numbers = #tpu.dot_dimension_numbers<[1], [0], [0], [1], [0, 0, 1, 1], [], []>} : vector<8x4xbf16>, vector<4x256xbf16>, vector<8x256xf32> -> vector<8x256xf32>
    %c0_4 = arith.constant 0 : index
    %c0_5 = arith.constant 0 : index
    %4 = vector.load %arg3[%c0_4, %c0_5] : memref<8x1xf32, #tpu.memory_space<vmem>>, vector<8x1xf32>
    %5 = vector.broadcast %4 : vector<8x1xf32> to vector<8x256xf32>
    %6 = arith.addf %3, %5 : vector<8x256xf32>
    %7 = vector.extract_strided_slice %6 {offsets = [0, 0], sizes = [8, 16], strides = [1, 1]} : vector<8x256xf32> to vector<8x16xf32>
    %c0_6 = arith.constant 0 : index
    %c0_7 = arith.constant 0 : index
    %c0_8 = arith.constant 0 : index
    %c0_9 = arith.constant 0 : index
    %8 = vector.load %arg4[%c0_6, %c0_7, %c0_8, %c0_9] : memref<1x8x16x16xf32, #tpu.memory_space<vmem>>, vector<1x8x1x16xf32>
    %9 = vector.shape_cast %8 : vector<1x8x1x16xf32> to vector<8x16xf32>
    %10 = vector.shape_cast %7 : vector<8x16xf32> to vector<1x8x1x16xf32>
    tpu.vector_store %arg4[%c0_6, %c0_7, %c0_8, %c0_9], %10 {strides = array<i32>} : memref<1x8x16x16xf32, #tpu.memory_space<vmem>>, vector<1x8x1x16xf32>,
    %11 = vector.extract_strided_slice %6 {offsets = [0, 16], sizes = [8, 16], strides = [1, 1]} : vector<8x256xf32> to vector<8x16xf32>
    %c0_10 = arith.constant 0 : index
    %c0_11 = arith.constant 0 : index
    %c1 = arith.constant 1 : index
    %c0_12 = arith.constant 0 : index
    %12 = vector.load %arg4[%c0_10, %c0_11, %c1, %c0_12] : memref<1x8x16x16xf32, #tpu.memory_space<vmem>>, vector<1x8x1x16xf32>
    %13 = vector.shape_cast %12 : vector<1x8x1x16xf32> to vector<8x16xf32>
    %14 = vector.shape_cast %11 : vector<8x16xf32> to vector<1x8x1x16xf32>
    tpu.vector_store %arg4[%c0_10, %c0_11, %c1, %c0_12], %14 {strides = array<i32>} : memref<1x8x16x16xf32, #tpu.memory_space<vmem>>, vector<1x8x1x16xf32>,
    %15 = vector.extract_strided_slice %6 {offsets = [0, 32], sizes = [8, 16], strides = [1, 1]} : vector<8x256xf32> to vector<8x16xf32>
    %c0_13 = arith.constant 0 : index
    %c0_14 = arith.constant 0 : index
    %c2 = arith.constant 2 : index
    %c0_15 = arith.constant 0 : index
    %16 = vector.load %arg4[%c0_13, %c0_14, %c2, %c0_15] : memref<1x8x16x16xf32, #tpu.memory_space<vmem>>, vector<1x8x1x16xf32>
    %17 = vector.shape_cast %16 : vector<1x8x1x16xf32> to vector<8x16xf32>
    %18 = vector.shape_cast %15 : vector<8x16xf32> to vector<1x8x1x16xf32>
    tpu.vector_store %arg4[%c0_13, %c0_14, %c2, %c0_15], %18 {strides = array<i32>} : memref<1x8x16x16xf32, #tpu.memory_space<vmem>>, vector<1x8x1x16xf32>,
    %19 = vector.extract_strided_slice %6 {offsets = [0, 48], sizes = [8, 16], strides = [1, 1]} : vector<8x256xf32> to vector<8x16xf32>
    %c0_16 = arith.constant 0 : index
    %c0_17 = arith.constant 0 : index
    %c3 = arith.constant 3 : index
    %c0_18 = arith.constant 0 : index
    %20 = vector.load %arg4[%c0_16, %c0_17, %c3, %c0_18] : memref<1x8x16x16xf32, #tpu.memory_space<vmem>>, vector<1x8x1x16xf32>
    %21 = vector.shape_cast %20 : vector<1x8x1x16xf32> to vector<8x16xf32>
    %22 = vector.shape_cast %19 : vector<8x16xf32> to vector<1x8x1x16xf32>
    tpu.vector_store %arg4[%c0_16, %c0_17, %c3, %c0_18], %22 {strides = array<i32>} : memref<1x8x16x16xf32, #tpu.memory_space<vmem>>, vector<1x8x1x16xf32>,
    %23 = vector.extract_strided_slice %6 {offsets = [0, 64], sizes = [8, 16], strides = [1, 1]} : vector<8x256xf32> to vector<8x16xf32>
    %c0_19 = arith.constant 0 : index
    %c0_20 = arith.constant 0 : index
    %c4 = arith.constant 4 : index
    %c0_21 = arith.constant 0 : index
    %24 = vector.load %arg4[%c0_19, %c0_20, %c4, %c0_21] : memref<1x8x16x16xf32, #tpu.memory_space<vmem>>, vector<1x8x1x16xf32>
    %25 = vector.shape_cast %24 : vector<1x8x1x16xf32> to vector<8x16xf32>
    %26 = vector.shape_cast %23 : vector<8x16xf32> to vector<1x8x1x16xf32>
    tpu.vector_store %arg4[%c0_19, %c0_20, %c4, %c0_21], %26 {strides = array<i32>} : memref<1x8x16x16xf32, #tpu.memory_space<vmem>>, vector<1x8x1x16xf32>,
    %27 = vector.extract_strided_slice %6 {offsets = [0, 80], sizes = [8, 16], strides = [1, 1]} : vector<8x256xf32> to vector<8x16xf32>
    %c0_22 = arith.constant 0 : index
    %c0_23 = arith.constant 0 : index
    %c5 = arith.constant 5 : index
    %c0_24 = arith.constant 0 : index
    %28 = vector.load %arg4[%c0_22, %c0_23, %c5, %c0_24] : memref<1x8x16x16xf32, #tpu.memory_space<vmem>>, vector<1x8x1x16xf32>
    %29 = vector.shape_cast %28 : vector<1x8x1x16xf32> to vector<8x16xf32>
    %30 = vector.shape_cast %27 : vector<8x16xf32> to vector<1x8x1x16xf32>
    tpu.vector_store %arg4[%c0_22, %c0_23, %c5, %c0_24], %30 {strides = array<i32>} : memref<1x8x16x16xf32, #tpu.memory_space<vmem>>, vector<1x8x1x16xf32>,
    %31 = vector.extract_strided_slice %6 {offsets = [0, 96], sizes = [8, 16], strides = [1, 1]} : vector<8x256xf32> to vector<8x16xf32>
    %c0_25 = arith.constant 0 : index
    %c0_26 = arith.constant 0 : index
    %c6 = arith.constant 6 : index
    %c0_27 = arith.constant 0 : index
    %32 = vector.load %arg4[%c0_25, %c0_26, %c6, %c0_27] : memref<1x8x16x16xf32, #tpu.memory_space<vmem>>, vector<1x8x1x16xf32>
    %33 = vector.shape_cast %32 : vector<1x8x1x16xf32> to vector<8x16xf32>
    %34 = vector.shape_cast %31 : vector<8x16xf32> to vector<1x8x1x16xf32>
    tpu.vector_store %arg4[%c0_25, %c0_26, %c6, %c0_27], %34 {strides = array<i32>} : memref<1x8x16x16xf32, #tpu.memory_space<vmem>>, vector<1x8x1x16xf32>,
    %35 = vector.extract_strided_slice %6 {offsets = [0, 112], sizes = [8, 16], strides = [1, 1]} : vector<8x256xf32> to vector<8x16xf32>
    %c0_28 = arith.constant 0 : index
    %c0_29 = arith.constant 0 : index
    %c7 = arith.constant 7 : index
    %c0_30 = arith.constant 0 : index
    %36 = vector.load %arg4[%c0_28, %c0_29, %c7, %c0_30] : memref<1x8x16x16xf32, #tpu.memory_space<vmem>>, vector<1x8x1x16xf32>
    %37 = vector.shape_cast %36 : vector<1x8x1x16xf32> to vector<8x16xf32>
    %38 = vector.shape_cast %35 : vector<8x16xf32> to vector<1x8x1x16xf32>
    tpu.vector_store %arg4[%c0_28, %c0_29, %c7, %c0_30], %38 {strides = array<i32>} : memref<1x8x16x16xf32, #tpu.memory_space<vmem>>, vector<1x8x1x16xf32>,
    %39 = vector.extract_strided_slice %6 {offsets = [0, 128], sizes = [8, 16], strides = [1, 1]} : vector<8x256xf32> to vector<8x16xf32>
    %c0_31 = arith.constant 0 : index
    %c0_32 = arith.constant 0 : index
    %c8 = arith.constant 8 : index
    %c0_33 = arith.constant 0 : index
    %40 = vector.load %arg4[%c0_31, %c0_32, %c8, %c0_33] : memref<1x8x16x16xf32, #tpu.memory_space<vmem>>, vector<1x8x1x16xf32>
    %41 = vector.shape_cast %40 : vector<1x8x1x16xf32> to vector<8x16xf32>
    %42 = vector.shape_cast %39 : vector<8x16xf32> to vector<1x8x1x16xf32>
    tpu.vector_store %arg4[%c0_31, %c0_32, %c8, %c0_33], %42 {strides = array<i32>} : memref<1x8x16x16xf32, #tpu.memory_space<vmem>>, vector<1x8x1x16xf32>,
    %43 = vector.extract_strided_slice %6 {offsets = [0, 144], sizes = [8, 16], strides = [1, 1]} : vector<8x256xf32> to vector<8x16xf32>
    %c0_34 = arith.constant 0 : index
    %c0_35 = arith.constant 0 : index
    %c9 = arith.constant 9 : index
    %c0_36 = arith.constant 0 : index
    %44 = vector.load %arg4[%c0_34, %c0_35, %c9, %c0_36] : memref<1x8x16x16xf32, #tpu.memory_space<vmem>>, vector<1x8x1x16xf32>
    %45 = vector.shape_cast %44 : vector<1x8x1x16xf32> to vector<8x16xf32>
    %46 = vector.shape_cast %43 : vector<8x16xf32> to vector<1x8x1x16xf32>
    tpu.vector_store %arg4[%c0_34, %c0_35, %c9, %c0_36], %46 {strides = array<i32>} : memref<1x8x16x16xf32, #tpu.memory_space<vmem>>, vector<1x8x1x16xf32>,
    %47 = vector.extract_strided_slice %6 {offsets = [0, 160], sizes = [8, 16], strides = [1, 1]} : vector<8x256xf32> to vector<8x16xf32>
    %c0_37 = arith.constant 0 : index
    %c0_38 = arith.constant 0 : index
    %c10 = arith.constant 10 : index
    %c0_39 = arith.constant 0 : index
    %48 = vector.load %arg4[%c0_37, %c0_38, %c10, %c0_39] : memref<1x8x16x16xf32, #tpu.memory_space<vmem>>, vector<1x8x1x16xf32>
    %49 = vector.shape_cast %48 : vector<1x8x1x16xf32> to vector<8x16xf32>
    %50 = vector.shape_cast %47 : vector<8x16xf32> to vector<1x8x1x16xf32>
    tpu.vector_store %arg4[%c0_37, %c0_38, %c10, %c0_39], %50 {strides = array<i32>} : memref<1x8x16x16xf32, #tpu.memory_space<vmem>>, vector<1x8x1x16xf32>,
    %51 = vector.extract_strided_slice %6 {offsets = [0, 176], sizes = [8, 16], strides = [1, 1]} : vector<8x256xf32> to vector<8x16xf32>
    %c0_40 = arith.constant 0 : index
    %c0_41 = arith.constant 0 : index
    %c11 = arith.constant 11 : index
    %c0_42 = arith.constant 0 : index
    %52 = vector.load %arg4[%c0_40, %c0_41, %c11, %c0_42] : memref<1x8x16x16xf32, #tpu.memory_space<vmem>>, vector<1x8x1x16xf32>
    %53 = vector.shape_cast %52 : vector<1x8x1x16xf32> to vector<8x16xf32>
    %54 = vector.shape_cast %51 : vector<8x16xf32> to vector<1x8x1x16xf32>
    tpu.vector_store %arg4[%c0_40, %c0_41, %c11, %c0_42], %54 {strides = array<i32>} : memref<1x8x16x16xf32, #tpu.memory_space<vmem>>, vector<1x8x1x16xf32>,
    %55 = vector.extract_strided_slice %6 {offsets = [0, 192], sizes = [8, 16], strides = [1, 1]} : vector<8x256xf32> to vector<8x16xf32>
    %c0_43 = arith.constant 0 : index
    %c0_44 = arith.constant 0 : index
    %c12 = arith.constant 12 : index
    %c0_45 = arith.constant 0 : index
    %56 = vector.load %arg4[%c0_43, %c0_44, %c12, %c0_45] : memref<1x8x16x16xf32, #tpu.memory_space<vmem>>, vector<1x8x1x16xf32>
    %57 = vector.shape_cast %56 : vector<1x8x1x16xf32> to vector<8x16xf32>
    %58 = vector.shape_cast %55 : vector<8x16xf32> to vector<1x8x1x16xf32>
    tpu.vector_store %arg4[%c0_43, %c0_44, %c12, %c0_45], %58 {strides = array<i32>} : memref<1x8x16x16xf32, #tpu.memory_space<vmem>>, vector<1x8x1x16xf32>,
    %59 = vector.extract_strided_slice %6 {offsets = [0, 208], sizes = [8, 16], strides = [1, 1]} : vector<8x256xf32> to vector<8x16xf32>
    %c0_46 = arith.constant 0 : index
    %c0_47 = arith.constant 0 : index
    %c13 = arith.constant 13 : index
    %c0_48 = arith.constant 0 : index
    %60 = vector.load %arg4[%c0_46, %c0_47, %c13, %c0_48] : memref<1x8x16x16xf32, #tpu.memory_space<vmem>>, vector<1x8x1x16xf32>
    %61 = vector.shape_cast %60 : vector<1x8x1x16xf32> to vector<8x16xf32>
    %62 = vector.shape_cast %59 : vector<8x16xf32> to vector<1x8x1x16xf32>
    tpu.vector_store %arg4[%c0_46, %c0_47, %c13, %c0_48], %62 {strides = array<i32>} : memref<1x8x16x16xf32, #tpu.memory_space<vmem>>, vector<1x8x1x16xf32>,
    %63 = vector.extract_strided_slice %6 {offsets = [0, 224], sizes = [8, 16], strides = [1, 1]} : vector<8x256xf32> to vector<8x16xf32>
    %c0_49 = arith.constant 0 : index
    %c0_50 = arith.constant 0 : index
    %c14 = arith.constant 14 : index
    %c0_51 = arith.constant 0 : index
    %64 = vector.load %arg4[%c0_49, %c0_50, %c14, %c0_51] : memref<1x8x16x16xf32, #tpu.memory_space<vmem>>, vector<1x8x1x16xf32>
    %65 = vector.shape_cast %64 : vector<1x8x1x16xf32> to vector<8x16xf32>
    %66 = vector.shape_cast %63 : vector<8x16xf32> to vector<1x8x1x16xf32>
    tpu.vector_store %arg4[%c0_49, %c0_50, %c14, %c0_51], %66 {strides = array<i32>} : memref<1x8x16x16xf32, #tpu.memory_space<vmem>>, vector<1x8x1x16xf32>,
    %67 = vector.extract_strided_slice %6 {offsets = [0, 240], sizes = [8, 16], strides = [1, 1]} : vector<8x256xf32> to vector<8x16xf32>
    %c0_52 = arith.constant 0 : index
    %c0_53 = arith.constant 0 : index
    %c15 = arith.constant 15 : index
    %c0_54 = arith.constant 0 : index
    %68 = vector.load %arg4[%c0_52, %c0_53, %c15, %c0_54] : memref<1x8x16x16xf32, #tpu.memory_space<vmem>>, vector<1x8x1x16xf32>
    %69 = vector.shape_cast %68 : vector<1x8x1x16xf32> to vector<8x16xf32>
    %70 = vector.shape_cast %67 : vector<8x16xf32> to vector<1x8x1x16xf32>
    tpu.vector_store %arg4[%c0_52, %c0_53, %c15, %c0_54], %70 {strides = array<i32>} : memref<1x8x16x16xf32, #tpu.memory_space<vmem>>, vector<1x8x1x16xf32>,
    return
  }
  func.func @transform_0(%arg0: i32) -> (i32, i32, i32) {
    %c0_i32 = arith.constant 0 : i32
    %c0_i32_0 = arith.constant 0 : i32
    %c0_i32_1 = arith.constant 0 : i32
    return %arg0, %c0_i32, %c0_i32_0 : i32, i32, i32
  }
  func.func @transform_1(%arg0: i32) -> (i32, i32) {
    %c0_i32 = arith.constant 0 : i32
    %c0_i32_0 = arith.constant 0 : i32
    %c0_i32_1 = arith.constant 0 : i32
    return %c0_i32, %c0_i32_0 : i32, i32
  }
  func.func @transform_2(%arg0: i32) -> (i32, i32) {
    %c0_i32 = arith.constant 0 : i32
    %c0_i32_0 = arith.constant 0 : i32
    %c0_i32_1 = arith.constant 0 : i32
    return %c0_i32, %c0_i32_0 : i32, i32
  }
  func.func @transform_3(%arg0: i32) -> (i32, i32, i32, i32) {
    %c0_i32 = arith.constant 0 : i32
    %c0_i32_0 = arith.constant 0 : i32
    %c0_i32_1 = arith.constant 0 : i32
    %c0_i32_2 = arith.constant 0 : i32
    return %arg0, %c0_i32, %c0_i32_0, %c0_i32_1 : i32, i32, i32, i32
  }
}

</mosaic_0001>

<llo_original>
// kernel: my_conv2d_apply.1
$region0: #{my_conv2d_apply.1}
  #allocation0 [shape = 'u32[]', space=smem, size = 0x4, offset = 0x4, fixed_abs, tag = 'smem constant byte address 0x4 - core index']
  #allocation1 [shape = 'u32[144,128]{1,0:T(1,128)}', space=vmem, size = 0x12000, scoped, tag = 'internal scratch']
  %s0 = inlined_call_operand.vmem [shape: bf16[2,4,256], index: 0, kind: input, shape index: {}]
  %s1 = inlined_call_operand.vmem [shape: bf16[8,4], index: 1, kind: input, shape index: {}]
  %s2 = inlined_call_operand.vmem [shape: f32[8,1], index: 2, kind: input, shape index: {}]
  %s3 = inlined_call_operand.hbm [shape: f32[2,8,16,16], index: 3, kind: output, shape index: {}]
  %s4 = sld [smem:[#allocation0]]
  $region45: #{my_conv2d_apply.1} parent=0
    _
  %s6 = ssub.s32 1, %s4
  %s7 = scalar_select 0, %s6, %s4
  $region1: #{my_conv2d_apply.1} parent=0
    #allocation2 [shape = 'u8[131072]{0}', space=vmem, size = 0x20000, scoped, tag = 'output window, operand 0']
    #allocation3 [shape = 's32[2]{0}', space=sflag, size = 0x8, scoped, tag = 'scoped memory for my_conv2d_apply.1']
    %8 = vsyncpa [#allocation3], 0
    %s9 = scalar_lea.sflag [#allocation3], 1
    %10 = vsyncpa %s9, 0
    loop: start=0, step=1, limit=4
    $region2: #{my_conv2d_apply.1} parent=1 // loop_pre_header
      _
    $region3: #{my_conv2d_apply.1} parent=1 // loop_header
      %s12 = sphi 0, %s16
      %p13 = scmp.ge.s32.totalorder %s12, 4
      %s22 = sphi 0, %s24
      %s25 = sphi 0, %s22
      %s26 = sphi 0, %s25
      %s42 = sphi 0, %s26
      %s46 = sphi 0, %s46
      %s48 = sphi 0, %s46
      %s49 = sphi 0, %s48
      %s63 = sphi 0, %s49
      %s67 = sphi 0, %s67
      %s69 = sphi 0, %s67
      %s70 = sphi 0, %s69
      %s84 = sphi 0, %s70
      %s90 = sphi 0, %s92
      %s93 = sphi 0, %s90
      %s94 = sphi 0, %s93
      %s110 = sphi 0, %s94
    $region4: #{my_conv2d_apply.1} parent=1 // loop_header_branch
      %15 = sbr.rel (%p13) target = $region8
    $region5: #{my_conv2d_apply.1} parent=1 // loop_body
      %s17 = ssub.s32 %s12, 1
      %s18 = ssub.s32 %s12, 2
      %s19 = sadd.s32 %s12, 1
      %s20 = ssub.s32 %s12, %s19
      %p21 = scmp.eq.s32.totalorder %s20, 0
      %s23 = sadd.s32 %s22, 1
      %s24 = scalar_select %p21, %s22, %s23
      %p27 = pneg %p21
      %p28 = scmp.eq.s32.totalorder %s12, 1
      %p29 = por %p27, %p28
      %p30 = scmp.ne.s32.totalorder %s22, %s25
      %p31 = scmp.eq.s32.totalorder %s12, 0
      %p32 = por %p30, %p31
      %p33 = scmp.ne.s32.totalorder %s22, %s25
      %p34 = scmp.eq.s32.totalorder %s17, 1
      %p35 = por %p33, %p34
      %p36 = scmp.ne.s32.totalorder %s25, %s26
      %p37 = scmp.eq.s32.totalorder %s17, 0
      %p38 = por %p36, %p37
      %p39 = scmp.ne.s32.totalorder %s25, %s26
      %p40 = scmp.eq.s32.totalorder %s18, 1
      %p41 = por %p39, %p40
      %p43 = scmp.ne.s32.totalorder %s26, %s42
      %p44 = scmp.eq.s32.totalorder %s18, 0
      %p45 = por %p43, %p44
      %s47 = sadd.s32 %s46, 1
      %p50 = scmp.eq.s32.totalorder %s12, 1
      %p51 = scmp.ne.s32.totalorder %s46, %s48
      %p52 = scmp.eq.s32.totalorder %s12, 0
      %p53 = por %p51, %p52
      %p54 = scmp.ne.s32.totalorder %s46, %s48
      %p55 = scmp.eq.s32.totalorder %s17, 1
      %p56 = por %p54, %p55
      %p57 = scmp.ne.s32.totalorder %s48, %s49
      %p58 = scmp.eq.s32.totalorder %s17, 0
      %p59 = por %p57, %p58
      %p60 = scmp.ne.s32.totalorder %s48, %s49
      %p61 = scmp.eq.s32.totalorder %s18, 1
      %p62 = por %p60, %p61
      %p64 = scmp.ne.s32.totalorder %s49, %s63
      %p65 = scmp.eq.s32.totalorder %s18, 0
      %p66 = por %p64, %p65
      %s68 = sadd.s32 %s67, 1
      %p71 = scmp.eq.s32.totalorder %s12, 1
      %p72 = scmp.ne.s32.totalorder %s67, %s69
      %p73 = scmp.eq.s32.totalorder %s12, 0
      %p74 = por %p72, %p73
      %p75 = scmp.ne.s32.totalorder %s67, %s69
      %p76 = scmp.eq.s32.totalorder %s17, 1
      %p77 = por %p75, %p76
      %p78 = scmp.ne.s32.totalorder %s69, %s70
      %p79 = scmp.eq.s32.totalorder %s17, 0
      %p80 = por %p78, %p79
      %p81 = scmp.ne.s32.totalorder %s69, %s70
      %p82 = scmp.eq.s32.totalorder %s18, 1
      %p83 = por %p81, %p82
      %p85 = scmp.ne.s32.totalorder %s70, %s84
      %p86 = scmp.eq.s32.totalorder %s18, 0
      %p87 = por %p85, %p86
      %s88 = ssub.s32 %s12, %s19
      %p89 = scmp.eq.s32.totalorder %s88, 0
      %s91 = sadd.s32 %s90, 1
      %s92 = scalar_select %p89, %s90, %s91
      %p95 = pneg %p89
      %p96 = scmp.eq.s32.totalorder %s12, 1
      %p97 = por %p95, %p96
      %p98 = scmp.ne.s32.totalorder %s90, %s93
      %p99 = scmp.eq.s32.totalorder %s12, 0
      %p100 = por %p98, %p99
      %p101 = scmp.ne.s32.totalorder %s90, %s93
      %p102 = scmp.eq.s32.totalorder %s17, 1
      %p103 = por %p101, %p102
      %p104 = scmp.ne.s32.totalorder %s93, %s94
      %p105 = scmp.eq.s32.totalorder %s17, 0
      %p106 = por %p104, %p105
      %p107 = scmp.ne.s32.totalorder %s93, %s94
      %p108 = scmp.eq.s32.totalorder %s18, 1
      %p109 = por %p107, %p108
      %p111 = scmp.ne.s32.totalorder %s94, %s110
      %p112 = scmp.eq.s32.totalorder %s18, 0
      %p113 = por %p111, %p112
      %p114 = scmp.le.s32.totalorder 1, %s12
      %p115 = scmp.lt.s32.totalorder %s12, 3
      %p116 = pnand %p114, %p115
      %p117 = pneg %p116
      // Predicated region
      $region9: #{my_conv2d_apply.1} parent=5 // pred_check
        _
      $region10: #{my_conv2d_apply.1} parent=5 // pred_check_branch
        %119 = sbr.rel (%p116) target = $region12
      $region11: #{my_conv2d_apply.1} parent=5 // pred_region
        %s120 = ssub.s32 %s12, 1
        // Predicated region
        $region13: #{my_conv2d_apply.1} parent=11 // pred_check
          %p121 = pneg %p59
        $region14: #{my_conv2d_apply.1} parent=11 // pred_check_branch
          %123 = sbr.rel (%p121) target = $region16
        $region15: #{my_conv2d_apply.1} parent=11 // pred_region
          _
        $region16: #{my_conv2d_apply.1} parent=11 // pred_fallthru
          _
        // Predicated region
        $region17: #{my_conv2d_apply.1} parent=11 // pred_check
          %p124 = pneg %p80
        $region18: #{my_conv2d_apply.1} parent=11 // pred_check_branch
          %126 = sbr.rel (%p124) target = $region20
        $region19: #{my_conv2d_apply.1} parent=11 // pred_region
          _
        $region20: #{my_conv2d_apply.1} parent=11 // pred_fallthru
          _
      $region12: #{my_conv2d_apply.1} parent=5 // pred_fallthru
        _
      %p127 = scmp.lt.s32.totalorder %s12, 2
      // Predicated region
      $region21: #{my_conv2d_apply.1} parent=5 // pred_check
        %p128 = pneg %p127
      $region22: #{my_conv2d_apply.1} parent=5 // pred_check_branch
        %130 = sbr.rel (%p128) target = $region24
      $region23: #{my_conv2d_apply.1} parent=5 // pred_region
        // Predicated region
        $region25: #{my_conv2d_apply.1} parent=23 // pred_check
          %p131 = pneg %p32
        $region26: #{my_conv2d_apply.1} parent=23 // pred_check_branch
          %133 = sbr.rel (%p131) target = $region28
        $region27: #{my_conv2d_apply.1} parent=23 // pred_region
          %p134 = scmp.lt.s32.totalorder %s12, 1
          %s135 = scalar_select %p134, %s12, 1
          %s136 = smul.addr %s135, 2
          %s137 = smul.addr %s136, 2
          %s138 = scalar_lea.vmem %s0, %s137
        $region28: #{my_conv2d_apply.1} parent=23 // pred_fallthru
          _
      $region24: #{my_conv2d_apply.1} parent=5 // pred_fallthru
        _
      %p139 = scmp.le.s32.totalorder 1, %s12
      %p140 = scmp.lt.s32.totalorder %s12, 3
      %p141 = pnand %p139, %p140
      %p142 = pneg %p141
      // Predicated region
      $region29: #{my_conv2d_apply.1} parent=5 // pred_check
        _
      $region30: #{my_conv2d_apply.1} parent=5 // pred_check_branch
        %144 = sbr.rel (%p141) target = $region32
      $region31: #{my_conv2d_apply.1} parent=5 // pred_region
        %s145 = ssub.s32 %s12, 1
        %p146 = scmp.lt.s32.totalorder %s17, 1
        %s147 = scalar_select %p146, %s17, 1
        %s148 = smul.addr %s147, 2
        %s149 = smul.addr %s148, 2
        %s150 = scalar_lea.vmem %s0, %s149
        %p151 = pneg %p38
        %p152 = pneg %p35
        %p153 = pneg %p59
        %p154 = pneg %p56
        %p155 = pneg %p80
        %p156 = pneg %p77
        %p157 = pneg %p106
        %p158 = pneg %p103
        %s159 = sand.u32 %s93, 1
        %s160 = scalar_lea.sflag [#allocation3], %s159
        %s161 = sand.u32 %s93, 1
        %s162 = smul.addr %s161, 128
        %s163 = scalar_lea.vmem [#allocation2], %s162
        %p164 = scmp.lt.s32.totalorder %s17, 1
        %s165 = scalar_select %p164, %s17, 1
        %s166 = smul.addr %s165, 2
        %s167 = smul.addr %s166, 2
        %s168 = scalar_lea.vmem %s0, %s167
        %v170 = vld [vmem:[%s168] sm:$0xf]
        %v171 = vld [vmem:[%s1] sm:$0xf]
        %v172 = vld [vmem:[%s2] sm:$0xff]
        %174 = vset.pattern.permute.xlu0 0
        %175 = vperm.xlu0 %174, %v172
        %v176 = vpop.permute.xlu0 %175
        %v180 = vunpack.c.l.s4 1983009808
        %v181 = vunpack.c.0.s8 %v180
        %v182 = vlaneseq
        %v183 = vshrl.u32 %v182, 7
        %v184 = vsub.s32 %v181, %v183
        %v185 = vrot.slane %v170, %v184
        %v186 = vcombine.high %v185, %v185
        %vm187 = vcmask 31744
        %v189 = vsel %vm187, %v171, 0
        %vm191 = vcmask 1041408
        %v193 = vsel %vm191, %v185, 0
        %v196 = vsel %vm191, %v186, 0
        %198 = vmatprep.subr.bf16.mxu0 %v196
        %199 = vmatpush1.bf16.msra.mxu0 %v193
        %200 = vmatprep.subr.bf16.mxu0 0
        %201 = vmatpush1.bf16.msra.mxu0 0
        %202 = vmatprep.subr.bf16.mxu0 0
        %203 = vmatpush1.bf16.msra.mxu0 0
        %204 = vmatprep.subr.bf16.mxu0 0
        %205 = vmatpush1.bf16.msra.mxu0 0
        %206 = vmatprep.subr.bf16.mxu0 0
        %207 = vmatpush1.bf16.msra.mxu0 0
        %208 = vmatprep.subr.bf16.mxu0 0
        %209 = vmatpush1.bf16.msra.mxu0 0
        %210 = vmatprep.subr.bf16.mxu0 0
        %211 = vmatpush1.bf16.msra.mxu0 0
        %212 = vmatprep.subr.bf16.mxu0 0
        %213 = vmatpush1.bf16.msra.mxu0 0
        %214 = vmatprep.subr.bf16.mxu0 0
        %215 = vmatpush1.bf16.msra.mxu0 0
        %216 = vmatprep.subr.bf16.mxu0 0
        %217 = vmatpush1.bf16.msra.mxu0 0
        %218 = vmatprep.subr.bf16.mxu0 0
        %219 = vmatpush1.bf16.msra.mxu0 0
        %220 = vmatprep.subr.bf16.mxu0 0
        %221 = vmatpush1.bf16.msra.mxu0 0
        %222 = vmatprep.subr.bf16.mxu0 0
        %223 = vmatpush1.bf16.msra.mxu0 0
        %224 = vmatprep.subr.bf16.mxu0 0
        %225 = vmatpush1.bf16.msra.mxu0 0
        %226 = vmatprep.subr.bf16.mxu0 0
        %227 = vmatpush1.bf16.msra.mxu0 0
        %228 = vmatprep.subr.bf16.mxu0 0
        %229 = vmatpush1.bf16.msra.mxu0 0
        %230 = vmatprep.mubr.bf16.mxu0 0
        %231 = vmatmul.mubr.bf16.gmra.mrb[0].mxu0 %v189
        %v232 = vpop.f32.mrb[0].mxu0
        %v233 = vadd.f32 %v176, %v232
        %v234 = vpop.f32.mrb[0].mxu0
        %v235 = vadd.f32 %v176, %v234
        %v236 = vpop.f32.mrb[0].mxu0
        %v237 = vpop.f32.mrb[0].mxu0
        %238 = vdwg.mxu0
        %v240 = vcombine.high %v233, %v233
        %v242 = vunpack.c.l.s4 1966171168
        %v243 = vunpack.c.0.s8 %v242
        %v244 = vlaneseq
        %v245 = vshrl.u32 %v244, 7
        %v246 = vsub.s32 %v243, %v245
        %v247 = vrot.slane %v233, %v246
        %v249 = vunpack.c.l.s4 1966171168
        %v250 = vunpack.c.0.s8 %v249
        %v251 = vlaneseq
        %v252 = vshrl.u32 %v251, 7
        %v253 = vsub.s32 %v250, %v252
        %v254 = vrot.slane %v240, %v253
        %v255 = vcombine.high %v247, %v247
        %v256 = vcombine.high %v254, %v254
        %v258 = vunpack.c.l.s4 1966171168
        %v259 = vunpack.c.0.s8 %v258
        %v260 = vlaneseq
        %v261 = vshrl.u32 %v260, 7
        %v262 = vsub.s32 %v259, %v261
        %v263 = vrot.slane %v247, %v262
        %v265 = vunpack.c.l.s4 1966171168
        %v266 = vunpack.c.0.s8 %v265
        %v267 = vlaneseq
        %v268 = vshrl.u32 %v267, 7
        %v269 = vsub.s32 %v266, %v268
        %v270 = vrot.slane %v254, %v269
        %v272 = vunpack.c.l.s4 1966171168
        %v273 = vunpack.c.0.s8 %v272
        %v274 = vlaneseq
        %v275 = vshrl.u32 %v274, 7
        %v276 = vsub.s32 %v273, %v275
        %v277 = vrot.slane %v255, %v276
        %v279 = vunpack.c.l.s4 1966171168
        %v280 = vunpack.c.0.s8 %v279
        %v281 = vlaneseq
        %v282 = vshrl.u32 %v281, 7
        %v283 = vsub.s32 %v280, %v282
        %v284 = vrot.slane %v256, %v283
        %v285 = vcombine.high %v263, %v263
        %v286 = vcombine.high %v270, %v270
        %v287 = vcombine.high %v277, %v277
        %v288 = vcombine.high %v284, %v284
        %vm297 = vcmask 122880
        %298 = vst.msk [vmem:[%s163] sm:$0x1] %vm297, %v263
        %299 = vst.msk [vmem:[%s163 + $0x10] sm:$0x1] %vm297, %v277
        %300 = vst.msk [vmem:[%s163 + $0x20] sm:$0x1] %vm297, %v285
        %301 = vst.msk [vmem:[%s163 + $0x30] sm:$0x1] %vm297, %v287
        %302 = vst.msk [vmem:[%s163 + $0x40] sm:$0x1] %vm297, %v270
        %303 = vst.msk [vmem:[%s163 + $0x50] sm:$0x1] %vm297, %v284
        %304 = vst.msk [vmem:[%s163 + $0x60] sm:$0x1] %vm297, %v286
        %305 = vst.msk [vmem:[%s163 + $0x70] sm:$0x1] %vm297, %v288
        %v306 = vlaneseq
        %v307 = vshrl.u32 %v306, 7
        %v308 = vsub.s32 0, %v307
        %v309 = vrot.slane %v263, %v308
        %v310 = vlaneseq
        %v311 = vshrl.u32 %v310, 7
        %v312 = vsub.s32 0, %v311
        %v313 = vrot.slane %v277, %v312
        %v314 = vlaneseq
        %v315 = vshrl.u32 %v314, 7
        %v316 = vsub.s32 0, %v315
        %v317 = vrot.slane %v285, %v316
        %v318 = vlaneseq
        %v319 = vshrl.u32 %v318, 7
        %v320 = vsub.s32 0, %v319
        %v321 = vrot.slane %v287, %v320
        %v322 = vlaneseq
        %v323 = vshrl.u32 %v322, 7
        %v324 = vsub.s32 0, %v323
        %v325 = vrot.slane %v270, %v324
        %v326 = vlaneseq
        %v327 = vshrl.u32 %v326, 7
        %v328 = vsub.s32 0, %v327
        %v329 = vrot.slane %v284, %v328
        %v330 = vlaneseq
        %v331 = vshrl.u32 %v330, 7
        %v332 = vsub.s32 0, %v331
        %v333 = vrot.slane %v286, %v332
        %v334 = vlaneseq
        %v335 = vshrl.u32 %v334, 7
        %v336 = vsub.s32 0, %v335
        %v337 = vrot.slane %v288, %v336
        %338 = vrot.lane.b32.xlu0 %v309, 112
        %v339 = vpop.permute.xlu0 %338
        %340 = vrot.lane.b32.xlu0 %v313, 112
        %v341 = vpop.permute.xlu0 %340
        %342 = vrot.lane.b32.xlu0 %v317, 112
        %v343 = vpop.permute.xlu0 %342
        %344 = vrot.lane.b32.xlu0 %v321, 112
        %v345 = vpop.permute.xlu0 %344
        %346 = vrot.lane.b32.xlu0 %v325, 112
        %v347 = vpop.permute.xlu0 %346
        %348 = vrot.lane.b32.xlu0 %v329, 112
        %v349 = vpop.permute.xlu0 %348
        %350 = vrot.lane.b32.xlu0 %v333, 112
        %v351 = vpop.permute.xlu0 %350
        %352 = vrot.lane.b32.xlu0 %v337, 112
        %v353 = vpop.permute.xlu0 %352
        %362 = vst.msk [vmem:[%s163 + $0x1] sm:$0x1] %vm297, %v339
        %363 = vst.msk [vmem:[%s163 + $0x11] sm:$0x1] %vm297, %v341
        %364 = vst.msk [vmem:[%s163 + $0x21] sm:$0x1] %vm297, %v343
        %365 = vst.msk [vmem:[%s163 + $0x31] sm:$0x1] %vm297, %v345
        %366 = vst.msk [vmem:[%s163 + $0x41] sm:$0x1] %vm297, %v347
        %367 = vst.msk [vmem:[%s163 + $0x51] sm:$0x1] %vm297, %v349
        %368 = vst.msk [vmem:[%s163 + $0x61] sm:$0x1] %vm297, %v351
        %369 = vst.msk [vmem:[%s163 + $0x71] sm:$0x1] %vm297, %v353
        %370 = vrot.lane.b32.xlu0 %v309, 96
        %v371 = vpop.permute.xlu0 %370
        %372 = vrot.lane.b32.xlu0 %v313, 96
        %v373 = vpop.permute.xlu0 %372
        %374 = vrot.lane.b32.xlu0 %v317, 96
        %v375 = vpop.permute.xlu0 %374
        %376 = vrot.lane.b32.xlu0 %v321, 96
        %v377 = vpop.permute.xlu0 %376
        %378 = vrot.lane.b32.xlu0 %v325, 96
        %v379 = vpop.permute.xlu0 %378
        %380 = vrot.lane.b32.xlu0 %v329, 96
        %v381 = vpop.permute.xlu0 %380
        %382 = vrot.lane.b32.xlu0 %v333, 96
        %v383 = vpop.permute.xlu0 %382
        %384 = vrot.lane.b32.xlu0 %v337, 96
        %v385 = vpop.permute.xlu0 %384
        %394 = vst.msk [vmem:[%s163 + $0x2] sm:$0x1] %vm297, %v371
        %395 = vst.msk [vmem:[%s163 + $0x12] sm:$0x1] %vm297, %v373
        %396 = vst.msk [vmem:[%s163 + $0x22] sm:$0x1] %vm297, %v375
        %397 = vst.msk [vmem:[%s163 + $0x32] sm:$0x1] %vm297, %v377
        %398 = vst.msk [vmem:[%s163 + $0x42] sm:$0x1] %vm297, %v379
        %399 = vst.msk [vmem:[%s163 + $0x52] sm:$0x1] %vm297, %v381
        %400 = vst.msk [vmem:[%s163 + $0x62] sm:$0x1] %vm297, %v383
        %401 = vst.msk [vmem:[%s163 + $0x72] sm:$0x1] %vm297, %v385
        %402 = vrot.lane.b32.xlu0 %v309, 80
        %v403 = vpop.permute.xlu0 %402
        %404 = vrot.lane.b32.xlu0 %v313, 80
        %v405 = vpop.permute.xlu0 %404
        %406 = vrot.lane.b32.xlu0 %v317, 80
        %v407 = vpop.permute.xlu0 %406
        %408 = vrot.lane.b32.xlu0 %v321, 80
        %v409 = vpop.permute.xlu0 %408
        %410 = vrot.lane.b32.xlu0 %v325, 80
        %v411 = vpop.permute.xlu0 %410
        %412 = vrot.lane.b32.xlu0 %v329, 80
        %v413 = vpop.permute.xlu0 %412
        %414 = vrot.lane.b32.xlu0 %v333, 80
        %v415 = vpop.permute.xlu0 %414
        %416 = vrot.lane.b32.xlu0 %v337, 80
        %v417 = vpop.permute.xlu0 %416
        %426 = vst.msk [vmem:[%s163 + $0x3] sm:$0x1] %vm297, %v403
        %427 = vst.msk [vmem:[%s163 + $0x13] sm:$0x1] %vm297, %v405
        %428 = vst.msk [vmem:[%s163 + $0x23] sm:$0x1] %vm297, %v407
        %429 = vst.msk [vmem:[%s163 + $0x33] sm:$0x1] %vm297, %v409
        %430 = vst.msk [vmem:[%s163 + $0x43] sm:$0x1] %vm297, %v411
        %431 = vst.msk [vmem:[%s163 + $0x53] sm:$0x1] %vm297, %v413
        %432 = vst.msk [vmem:[%s163 + $0x63] sm:$0x1] %vm297, %v415
        %433 = vst.msk [vmem:[%s163 + $0x73] sm:$0x1] %vm297, %v417
        %434 = vrot.lane.b32.xlu0 %v309, 64
        %v435 = vpop.permute.xlu0 %434
        %436 = vrot.lane.b32.xlu0 %v313, 64
        %v437 = vpop.permute.xlu0 %436
        %438 = vrot.lane.b32.xlu0 %v317, 64
        %v439 = vpop.permute.xlu0 %438
        %440 = vrot.lane.b32.xlu0 %v321, 64
        %v441 = vpop.permute.xlu0 %440
        %442 = vrot.lane.b32.xlu0 %v325, 64
        %v443 = vpop.permute.xlu0 %442
        %444 = vrot.lane.b32.xlu0 %v329, 64
        %v445 = vpop.permute.xlu0 %444
        %446 = vrot.lane.b32.xlu0 %v333, 64
        %v447 = vpop.permute.xlu0 %446
        %448 = vrot.lane.b32.xlu0 %v337, 64
        %v449 = vpop.permute.xlu0 %448
        %458 = vst.msk [vmem:[%s163 + $0x4] sm:$0x1] %vm297, %v435
        %459 = vst.msk [vmem:[%s163 + $0x14] sm:$0x1] %vm297, %v437
        %460 = vst.msk [vmem:[%s163 + $0x24] sm:$0x1] %vm297, %v439
        %461 = vst.msk [vmem:[%s163 + $0x34] sm:$0x1] %vm297, %v441
        %462 = vst.msk [vmem:[%s163 + $0x44] sm:$0x1] %vm297, %v443
        %463 = vst.msk [vmem:[%s163 + $0x54] sm:$0x1] %vm297, %v445
        %464 = vst.msk [vmem:[%s163 + $0x64] sm:$0x1] %vm297, %v447
        %465 = vst.msk [vmem:[%s163 + $0x74] sm:$0x1] %vm297, %v449
        %466 = vrot.lane.b32.xlu0 %v309, 48
        %v467 = vpop.permute.xlu0 %466
        %468 = vrot.lane.b32.xlu0 %v313, 48
        %v469 = vpop.permute.xlu0 %468
        %470 = vrot.lane.b32.xlu0 %v317, 48
        %v471 = vpop.permute.xlu0 %470
        %472 = vrot.lane.b32.xlu0 %v321, 48
        %v473 = vpop.permute.xlu0 %472
        %474 = vrot.lane.b32.xlu0 %v325, 48
        %v475 = vpop.permute.xlu0 %474
        %476 = vrot.lane.b32.xlu0 %v329, 48
        %v477 = vpop.permute.xlu0 %476
        %478 = vrot.lane.b32.xlu0 %v333, 48
        %v479 = vpop.permute.xlu0 %478
        %480 = vrot.lane.b32.xlu0 %v337, 48
        %v481 = vpop.permute.xlu0 %480
        %490 = vst.msk [vmem:[%s163 + $0x5] sm:$0x1] %vm297, %v467
        %491 = vst.msk [vmem:[%s163 + $0x15] sm:$0x1] %vm297, %v469
        %492 = vst.msk [vmem:[%s163 + $0x25] sm:$0x1] %vm297, %v471
        %493 = vst.msk [vmem:[%s163 + $0x35] sm:$0x1] %vm297, %v473
        %494 = vst.msk [vmem:[%s163 + $0x45] sm:$0x1] %vm297, %v475
        %495 = vst.msk [vmem:[%s163 + $0x55] sm:$0x1] %vm297, %v477
        %496 = vst.msk [vmem:[%s163 + $0x65] sm:$0x1] %vm297, %v479
        %497 = vst.msk [vmem:[%s163 + $0x75] sm:$0x1] %vm297, %v481
        %498 = vrot.lane.b32.xlu0 %v309, 32
        %v499 = vpop.permute.xlu0 %498
        %500 = vrot.lane.b32.xlu0 %v313, 32
        %v501 = vpop.permute.xlu0 %500
        %502 = vrot.lane.b32.xlu0 %v317, 32
        %v503 = vpop.permute.xlu0 %502
        %504 = vrot.lane.b32.xlu0 %v321, 32
        %v505 = vpop.permute.xlu0 %504
        %506 = vrot.lane.b32.xlu0 %v325, 32
        %v507 = vpop.permute.xlu0 %506
        %508 = vrot.lane.b32.xlu0 %v329, 32
        %v509 = vpop.permute.xlu0 %508
        %510 = vrot.lane.b32.xlu0 %v333, 32
        %v511 = vpop.permute.xlu0 %510
        %512 = vrot.lane.b32.xlu0 %v337, 32
        %v513 = vpop.permute.xlu0 %512
        %522 = vst.msk [vmem:[%s163 + $0x6] sm:$0x1] %vm297, %v499
        %523 = vst.msk [vmem:[%s163 + $0x16] sm:$0x1] %vm297, %v501
        %524 = vst.msk [vmem:[%s163 + $0x26] sm:$0x1] %vm297, %v503
        %525 = vst.msk [vmem:[%s163 + $0x36] sm:$0x1] %vm297, %v505
        %526 = vst.msk [vmem:[%s163 + $0x46] sm:$0x1] %vm297, %v507
        %527 = vst.msk [vmem:[%s163 + $0x56] sm:$0x1] %vm297, %v509
        %528 = vst.msk [vmem:[%s163 + $0x66] sm:$0x1] %vm297, %v511
        %529 = vst.msk [vmem:[%s163 + $0x76] sm:$0x1] %vm297, %v513
        %530 = vrot.lane.b32.xlu0 %v309, 16
        %v531 = vpop.permute.xlu0 %530
        %532 = vrot.lane.b32.xlu0 %v313, 16
        %v533 = vpop.permute.xlu0 %532
        %534 = vrot.lane.b32.xlu0 %v317, 16
        %v535 = vpop.permute.xlu0 %534
        %536 = vrot.lane.b32.xlu0 %v321, 16
        %v537 = vpop.permute.xlu0 %536
        %538 = vrot.lane.b32.xlu0 %v325, 16
        %v539 = vpop.permute.xlu0 %538
        %540 = vrot.lane.b32.xlu0 %v329, 16
        %v541 = vpop.permute.xlu0 %540
        %542 = vrot.lane.b32.xlu0 %v333, 16
        %v543 = vpop.permute.xlu0 %542
        %544 = vrot.lane.b32.xlu0 %v337, 16
        %v545 = vpop.permute.xlu0 %544
        %554 = vst.msk [vmem:[%s163 + $0x7] sm:$0x1] %vm297, %v531
        %555 = vst.msk [vmem:[%s163 + $0x17] sm:$0x1] %vm297, %v533
        %556 = vst.msk [vmem:[%s163 + $0x27] sm:$0x1] %vm297, %v535
        %557 = vst.msk [vmem:[%s163 + $0x37] sm:$0x1] %vm297, %v537
        %558 = vst.msk [vmem:[%s163 + $0x47] sm:$0x1] %vm297, %v539
        %559 = vst.msk [vmem:[%s163 + $0x57] sm:$0x1] %vm297, %v541
        %560 = vst.msk [vmem:[%s163 + $0x67] sm:$0x1] %vm297, %v543
        %561 = vst.msk [vmem:[%s163 + $0x77] sm:$0x1] %vm297, %v545
        %v563 = vcombine.high %v235, %v235
        %v565 = vunpack.c.l.s4 1966171168
        %v566 = vunpack.c.0.s8 %v565
        %v567 = vlaneseq
        %v568 = vshrl.u32 %v567, 7
        %v569 = vsub.s32 %v566, %v568
        %v570 = vrot.slane %v235, %v569
        %v572 = vunpack.c.l.s4 1966171168
        %v573 = vunpack.c.0.s8 %v572
        %v574 = vlaneseq
        %v575 = vshrl.u32 %v574, 7
        %v576 = vsub.s32 %v573, %v575
        %v577 = vrot.slane %v563, %v576
        %v578 = vcombine.high %v570, %v570
        %v579 = vcombine.high %v577, %v577
        %v581 = vunpack.c.l.s4 1966171168
        %v582 = vunpack.c.0.s8 %v581
        %v583 = vlaneseq
        %v584 = vshrl.u32 %v583, 7
        %v585 = vsub.s32 %v582, %v584
        %v586 = vrot.slane %v570, %v585
        %v588 = vunpack.c.l.s4 1966171168
        %v589 = vunpack.c.0.s8 %v588
        %v590 = vlaneseq
        %v591 = vshrl.u32 %v590, 7
        %v592 = vsub.s32 %v589, %v591
        %v593 = vrot.slane %v577, %v592
        %v595 = vunpack.c.l.s4 1966171168
        %v596 = vunpack.c.0.s8 %v595
        %v597 = vlaneseq
        %v598 = vshrl.u32 %v597, 7
        %v599 = vsub.s32 %v596, %v598
        %v600 = vrot.slane %v578, %v599
        %v602 = vunpack.c.l.s4 1966171168
        %v603 = vunpack.c.0.s8 %v602
        %v604 = vlaneseq
        %v605 = vshrl.u32 %v604, 7
        %v606 = vsub.s32 %v603, %v605
        %v607 = vrot.slane %v579, %v606
        %v608 = vcombine.high %v586, %v586
        %v609 = vcombine.high %v593, %v593
        %v610 = vcombine.high %v600, %v600
        %v611 = vcombine.high %v607, %v607
        %620 = vst.msk [vmem:[%s163 + $0x8] sm:$0x1] %vm297, %v586
        %621 = vst.msk [vmem:[%s163 + $0x18] sm:$0x1] %vm297, %v600
        %622 = vst.msk [vmem:[%s163 + $0x28] sm:$0x1] %vm297, %v608
        %623 = vst.msk [vmem:[%s163 + $0x38] sm:$0x1] %vm297, %v610
        %624 = vst.msk [vmem:[%s163 + $0x48] sm:$0x1] %vm297, %v593
        %625 = vst.msk [vmem:[%s163 + $0x58] sm:$0x1] %vm297, %v607
        %626 = vst.msk [vmem:[%s163 + $0x68] sm:$0x1] %vm297, %v609
        %627 = vst.msk [vmem:[%s163 + $0x78] sm:$0x1] %vm297, %v611
        %v628 = vlaneseq
        %v629 = vshrl.u32 %v628, 7
        %v630 = vsub.s32 0, %v629
        %v631 = vrot.slane %v586, %v630
        %v632 = vlaneseq
        %v633 = vshrl.u32 %v632, 7
        %v634 = vsub.s32 0, %v633
        %v635 = vrot.slane %v600, %v634
        %v636 = vlaneseq
        %v637 = vshrl.u32 %v636, 7
        %v638 = vsub.s32 0, %v637
        %v639 = vrot.slane %v608, %v638
        %v640 = vlaneseq
        %v641 = vshrl.u32 %v640, 7
        %v642 = vsub.s32 0, %v641
        %v643 = vrot.slane %v610, %v642
        %v644 = vlaneseq
        %v645 = vshrl.u32 %v644, 7
        %v646 = vsub.s32 0, %v645
        %v647 = vrot.slane %v593, %v646
        %v648 = vlaneseq
        %v649 = vshrl.u32 %v648, 7
        %v650 = vsub.s32 0, %v649
        %v651 = vrot.slane %v607, %v650
        %v652 = vlaneseq
        %v653 = vshrl.u32 %v652, 7
        %v654 = vsub.s32 0, %v653
        %v655 = vrot.slane %v609, %v654
        %v656 = vlaneseq
        %v657 = vshrl.u32 %v656, 7
        %v658 = vsub.s32 0, %v657
        %v659 = vrot.slane %v611, %v658
        %660 = vrot.lane.b32.xlu0 %v631, 112
        %v661 = vpop.permute.xlu0 %660
        %662 = vrot.lane.b32.xlu0 %v635, 112
        %v663 = vpop.permute.xlu0 %662
        %664 = vrot.lane.b32.xlu0 %v639, 112
        %v665 = vpop.permute.xlu0 %664
        %666 = vrot.lane.b32.xlu0 %v643, 112
        %v667 = vpop.permute.xlu0 %666
        %668 = vrot.lane.b32.xlu0 %v647, 112
        %v669 = vpop.permute.xlu0 %668
        %670 = vrot.lane.b32.xlu0 %v651, 112
        %v671 = vpop.permute.xlu0 %670
        %672 = vrot.lane.b32.xlu0 %v655, 112
        %v673 = vpop.permute.xlu0 %672
        %674 = vrot.lane.b32.xlu0 %v659, 112
        %v675 = vpop.permute.xlu0 %674
        %684 = vst.msk [vmem:[%s163 + $0x9] sm:$0x1] %vm297, %v661
        %685 = vst.msk [vmem:[%s163 + $0x19] sm:$0x1] %vm297, %v663
        %686 = vst.msk [vmem:[%s163 + $0x29] sm:$0x1] %vm297, %v665
        %687 = vst.msk [vmem:[%s163 + $0x39] sm:$0x1] %vm297, %v667
        %688 = vst.msk [vmem:[%s163 + $0x49] sm:$0x1] %vm297, %v669
        %689 = vst.msk [vmem:[%s163 + $0x59] sm:$0x1] %vm297, %v671
        %690 = vst.msk [vmem:[%s163 + $0x69] sm:$0x1] %vm297, %v673
        %691 = vst.msk [vmem:[%s163 + $0x79] sm:$0x1] %vm297, %v675
        %692 = vrot.lane.b32.xlu0 %v631, 96
        %v693 = vpop.permute.xlu0 %692
        %694 = vrot.lane.b32.xlu0 %v635, 96
        %v695 = vpop.permute.xlu0 %694
        %696 = vrot.lane.b32.xlu0 %v639, 96
        %v697 = vpop.permute.xlu0 %696
        %698 = vrot.lane.b32.xlu0 %v643, 96
        %v699 = vpop.permute.xlu0 %698
        %700 = vrot.lane.b32.xlu0 %v647, 96
        %v701 = vpop.permute.xlu0 %700
        %702 = vrot.lane.b32.xlu0 %v651, 96
        %v703 = vpop.permute.xlu0 %702
        %704 = vrot.lane.b32.xlu0 %v655, 96
        %v705 = vpop.permute.xlu0 %704
        %706 = vrot.lane.b32.xlu0 %v659, 96
        %v707 = vpop.permute.xlu0 %706
        %716 = vst.msk [vmem:[%s163 + $0xa] sm:$0x1] %vm297, %v693
        %717 = vst.msk [vmem:[%s163 + $0x1a] sm:$0x1] %vm297, %v695
        %718 = vst.msk [vmem:[%s163 + $0x2a] sm:$0x1] %vm297, %v697
        %719 = vst.msk [vmem:[%s163 + $0x3a] sm:$0x1] %vm297, %v699
        %720 = vst.msk [vmem:[%s163 + $0x4a] sm:$0x1] %vm297, %v701
        %721 = vst.msk [vmem:[%s163 + $0x5a] sm:$0x1] %vm297, %v703
        %722 = vst.msk [vmem:[%s163 + $0x6a] sm:$0x1] %vm297, %v705
        %723 = vst.msk [vmem:[%s163 + $0x7a] sm:$0x1] %vm297, %v707
        %724 = vrot.lane.b32.xlu0 %v631, 80
        %v725 = vpop.permute.xlu0 %724
        %726 = vrot.lane.b32.xlu0 %v635, 80
        %v727 = vpop.permute.xlu0 %726
        %728 = vrot.lane.b32.xlu0 %v639, 80
        %v729 = vpop.permute.xlu0 %728
        %730 = vrot.lane.b32.xlu0 %v643, 80
        %v731 = vpop.permute.xlu0 %730
        %732 = vrot.lane.b32.xlu0 %v647, 80
        %v733 = vpop.permute.xlu0 %732
        %734 = vrot.lane.b32.xlu0 %v651, 80
        %v735 = vpop.permute.xlu0 %734
        %736 = vrot.lane.b32.xlu0 %v655, 80
        %v737 = vpop.permute.xlu0 %736
        %738 = vrot.lane.b32.xlu0 %v659, 80
        %v739 = vpop.permute.xlu0 %738
        %748 = vst.msk [vmem:[%s163 + $0xb] sm:$0x1] %vm297, %v725
        %749 = vst.msk [vmem:[%s163 + $0x1b] sm:$0x1] %vm297, %v727
        %750 = vst.msk [vmem:[%s163 + $0x2b] sm:$0x1] %vm297, %v729
        %751 = vst.msk [vmem:[%s163 + $0x3b] sm:$0x1] %vm297, %v731
        %752 = vst.msk [vmem:[%s163 + $0x4b] sm:$0x1] %vm297, %v733
        %753 = vst.msk [vmem:[%s163 + $0x5b] sm:$0x1] %vm297, %v735
        %754 = vst.msk [vmem:[%s163 + $0x6b] sm:$0x1] %vm297, %v737
        %755 = vst.msk [vmem:[%s163 + $0x7b] sm:$0x1] %vm297, %v739
        %756 = vrot.lane.b32.xlu0 %v631, 64
        %v757 = vpop.permute.xlu0 %756
        %758 = vrot.lane.b32.xlu0 %v635, 64
        %v759 = vpop.permute.xlu0 %758
        %760 = vrot.lane.b32.xlu0 %v639, 64
        %v761 = vpop.permute.xlu0 %760
        %762 = vrot.lane.b32.xlu0 %v643, 64
        %v763 = vpop.permute.xlu0 %762
        %764 = vrot.lane.b32.xlu0 %v647, 64
        %v765 = vpop.permute.xlu0 %764
        %766 = vrot.lane.b32.xlu0 %v651, 64
        %v767 = vpop.permute.xlu0 %766
        %768 = vrot.lane.b32.xlu0 %v655, 64
        %v769 = vpop.permute.xlu0 %768
        %770 = vrot.lane.b32.xlu0 %v659, 64
        %v771 = vpop.permute.xlu0 %770
        %780 = vst.msk [vmem:[%s163 + $0xc] sm:$0x1] %vm297, %v757
        %781 = vst.msk [vmem:[%s163 + $0x1c] sm:$0x1] %vm297, %v759
        %782 = vst.msk [vmem:[%s163 + $0x2c] sm:$0x1] %vm297, %v761
        %783 = vst.msk [vmem:[%s163 + $0x3c] sm:$0x1] %vm297, %v763
        %784 = vst.msk [vmem:[%s163 + $0x4c] sm:$0x1] %vm297, %v765
        %785 = vst.msk [vmem:[%s163 + $0x5c] sm:$0x1] %vm297, %v767
        %786 = vst.msk [vmem:[%s163 + $0x6c] sm:$0x1] %vm297, %v769
        %787 = vst.msk [vmem:[%s163 + $0x7c] sm:$0x1] %vm297, %v771
        %788 = vrot.lane.b32.xlu0 %v631, 48
        %v789 = vpop.permute.xlu0 %788
        %790 = vrot.lane.b32.xlu0 %v635, 48
        %v791 = vpop.permute.xlu0 %790
        %792 = vrot.lane.b32.xlu0 %v639, 48
        %v793 = vpop.permute.xlu0 %792
        %794 = vrot.lane.b32.xlu0 %v643, 48
        %v795 = vpop.permute.xlu0 %794
        %796 = vrot.lane.b32.xlu0 %v647, 48
        %v797 = vpop.permute.xlu0 %796
        %798 = vrot.lane.b32.xlu0 %v651, 48
        %v799 = vpop.permute.xlu0 %798
        %800 = vrot.lane.b32.xlu0 %v655, 48
        %v801 = vpop.permute.xlu0 %800
        %802 = vrot.lane.b32.xlu0 %v659, 48
        %v803 = vpop.permute.xlu0 %802
        %812 = vst.msk [vmem:[%s163 + $0xd] sm:$0x1] %vm297, %v789
        %813 = vst.msk [vmem:[%s163 + $0x1d] sm:$0x1] %vm297, %v791
        %814 = vst.msk [vmem:[%s163 + $0x2d] sm:$0x1] %vm297, %v793
        %815 = vst.msk [vmem:[%s163 + $0x3d] sm:$0x1] %vm297, %v795
        %816 = vst.msk [vmem:[%s163 + $0x4d] sm:$0x1] %vm297, %v797
        %817 = vst.msk [vmem:[%s163 + $0x5d] sm:$0x1] %vm297, %v799
        %818 = vst.msk [vmem:[%s163 + $0x6d] sm:$0x1] %vm297, %v801
        %819 = vst.msk [vmem:[%s163 + $0x7d] sm:$0x1] %vm297, %v803
        %820 = vrot.lane.b32.xlu0 %v631, 32
        %v821 = vpop.permute.xlu0 %820
        %822 = vrot.lane.b32.xlu0 %v635, 32
        %v823 = vpop.permute.xlu0 %822
        %824 = vrot.lane.b32.xlu0 %v639, 32
        %v825 = vpop.permute.xlu0 %824
        %826 = vrot.lane.b32.xlu0 %v643, 32
        %v827 = vpop.permute.xlu0 %826
        %828 = vrot.lane.b32.xlu0 %v647, 32
        %v829 = vpop.permute.xlu0 %828
        %830 = vrot.lane.b32.xlu0 %v651, 32
        %v831 = vpop.permute.xlu0 %830
        %832 = vrot.lane.b32.xlu0 %v655, 32
        %v833 = vpop.permute.xlu0 %832
        %834 = vrot.lane.b32.xlu0 %v659, 32
        %v835 = vpop.permute.xlu0 %834
        %844 = vst.msk [vmem:[%s163 + $0xe] sm:$0x1] %vm297, %v821
        %845 = vst.msk [vmem:[%s163 + $0x1e] sm:$0x1] %vm297, %v823
        %846 = vst.msk [vmem:[%s163 + $0x2e] sm:$0x1] %vm297, %v825
        %847 = vst.msk [vmem:[%s163 + $0x3e] sm:$0x1] %vm297, %v827
        %848 = vst.msk [vmem:[%s163 + $0x4e] sm:$0x1] %vm297, %v829
        %849 = vst.msk [vmem:[%s163 + $0x5e] sm:$0x1] %vm297, %v831
        %850 = vst.msk [vmem:[%s163 + $0x6e] sm:$0x1] %vm297, %v833
        %851 = vst.msk [vmem:[%s163 + $0x7e] sm:$0x1] %vm297, %v835
        %852 = vrot.lane.b32.xlu0 %v631, 16
        %v853 = vpop.permute.xlu0 %852
        %854 = vrot.lane.b32.xlu0 %v635, 16
        %v855 = vpop.permute.xlu0 %854
        %856 = vrot.lane.b32.xlu0 %v639, 16
        %v857 = vpop.permute.xlu0 %856
        %858 = vrot.lane.b32.xlu0 %v643, 16
        %v859 = vpop.permute.xlu0 %858
        %860 = vrot.lane.b32.xlu0 %v647, 16
        %v861 = vpop.permute.xlu0 %860
        %862 = vrot.lane.b32.xlu0 %v651, 16
        %v863 = vpop.permute.xlu0 %862
        %864 = vrot.lane.b32.xlu0 %v655, 16
        %v865 = vpop.permute.xlu0 %864
        %866 = vrot.lane.b32.xlu0 %v659, 16
        %v867 = vpop.permute.xlu0 %866
        %876 = vst.msk [vmem:[%s163 + $0xf] sm:$0x1] %vm297, %v853
        %877 = vst.msk [vmem:[%s163 + $0x1f] sm:$0x1] %vm297, %v855
        %878 = vst.msk [vmem:[%s163 + $0x2f] sm:$0x1] %vm297, %v857
        %879 = vst.msk [vmem:[%s163 + $0x3f] sm:$0x1] %vm297, %v859
        %880 = vst.msk [vmem:[%s163 + $0x4f] sm:$0x1] %vm297, %v861
        %881 = vst.msk [vmem:[%s163 + $0x5f] sm:$0x1] %vm297, %v863
        %882 = vst.msk [vmem:[%s163 + $0x6f] sm:$0x1] %vm297, %v865
        %883 = vst.msk [vmem:[%s163 + $0x7f] sm:$0x1] %vm297, %v867
        %s884 = sand.u32 %s93, 1
        %s885 = scalar_lea.sflag [#allocation3], %s884
        %s886 = sand.u32 %s93, 1
        %s887 = smul.addr %s886, 128
        %s888 = scalar_lea.vmem [#allocation2], %s887
        // Predicated region
        $region33: #{my_conv2d_apply.1} parent=31 // pred_check
          %p889 = pneg %p103
        $region34: #{my_conv2d_apply.1} parent=31 // pred_check_branch
          %891 = sbr.rel (%p889) target = $region36
        $region35: #{my_conv2d_apply.1} parent=31 // pred_region
          %s893 = ssub.s32 2048, 2048
          %894 = vsyncadd %s885, %s893
          %s895 = smul.addr %s17, 16
          %s896 = smul.addr %s895, 128
          %s897 = scalar_lea.hbm %s3, %s896
          %s898 = sshll.u32 %s888, 4
          %s899 = int_to_ptr.vmem [resolvable:$true] %s898
          %904 = dma.vmem_to_hbm [thread:$0]  %s899, 2048, %s897, %s885, 128, 128, 8
        $region36: #{my_conv2d_apply.1} parent=31 // pred_fallthru
          _
      $region32: #{my_conv2d_apply.1} parent=5 // pred_fallthru
        _
      %p905 = scmp.le.s32.totalorder 2, %s12
      // Predicated region
      $region37: #{my_conv2d_apply.1} parent=5 // pred_check
        %p906 = pneg %p905
      $region38: #{my_conv2d_apply.1} parent=5 // pred_check_branch
        %908 = sbr.rel (%p906) target = $region40
      $region39: #{my_conv2d_apply.1} parent=5 // pred_region
        %s909 = ssub.s32 %s12, 2
        // Predicated region
        $region41: #{my_conv2d_apply.1} parent=39 // pred_check
          %p910 = pneg %p109
        $region42: #{my_conv2d_apply.1} parent=39 // pred_check_branch
          %912 = sbr.rel (%p910) target = $region44
        $region43: #{my_conv2d_apply.1} parent=39 // pred_region
          %s913 = sand.u32 %s94, 1
          %s914 = scalar_lea.sflag [#allocation3], %s913
          %s915 = sand.u32 %s94, 1
          %s916 = smul.addr %s915, 128
          %s917 = scalar_lea.vmem [#allocation2], %s916
          %918 = dma.done %s914, 2048
        $region44: #{my_conv2d_apply.1} parent=39 // pred_fallthru
          _
      $region40: #{my_conv2d_apply.1} parent=5 // pred_fallthru
        _
    $region6: #{my_conv2d_apply.1} parent=1 // loop_footer
      %s16 = sadd.s32 1, %s12
    $region7: #{my_conv2d_apply.1} parent=1 // loop_footer_branch
      %11 = sbr.rel target = $region3
    $region8: #{my_conv2d_apply.1} parent=1 // loop_exit
      _
    %919 = vsyncpa [#allocation3], 1
    %s920 = scalar_lea.sflag [#allocation3], 1
    %921 = vsyncpa %s920, 1

</llo_original>
